<compile_context>
chip_gen: v7x
topology: tpu7x:2x2x1
jax: 0.10.0
libtpu: 0.0.40
codegen_flags: <defaults>
</compile_context>

<pallas_src>
import functools

import jax
import jax.numpy as jnp
import numpy as np
from jax.experimental import pallas as pl
from jax.experimental.pallas import tpu as pltpu

LANE = 128      # vreg lane width
SUBLANE = 8     # f32 sublane count


def _round_up(n, m):
    return ((n + m - 1) // m) * m


# ----------------------------------------------------------------------------
# Fused Pallas kernel: all FcnBlocks + proj_out in one body.
# ----------------------------------------------------------------------------
def fused_decoder_kernel(x_ref, *refs, num_blocks, residual_flags):
    """refs = [w1_0, b1_0, w2_0, b2_0, ..., w1_{n-1}, b1_{n-1}, w2_{n-1}, b2_{n-1},
               proj_w, proj_b, o_ref]
    Per block (BN folded into W/b, dropout = identity):
        h = x @ W1' + b1'           # fc1 + bn1
        r = h                       # residual taken before relu
        h = relu(h) @ W2' + b2'     # fc2 + bn2
        h = h + r                   # inner residual
        h = h + x   (iff residual_flags[i])   # outer FCN residual
    Then: out = x @ Wp + bp (proj_out).
    """
    o_ref = refs[-1]
    p = refs[:-1]
    x = x_ref[...]
    for i in range(num_blocks):
        w1, b1, w2, b2 = p[4 * i: 4 * i + 4]
        h = jnp.dot(x, w1[...], preferred_element_type=jnp.float32) + b1[...]
        r = h
        h = jnp.maximum(h, 0.0)
        h = jnp.dot(h, w2[...], preferred_element_type=jnp.float32) + b2[...]
        h = h + r
        if residual_flags[i]:
            h = h + x
        x = h
    pw = p[4 * num_blocks]
    pb = p[4 * num_blocks + 1]
    o_ref[...] = jnp.dot(x, pw[...], preferred_element_type=jnp.float32) + pb[...]


# ----------------------------------------------------------------------------
# Deterministic raw parameter construction (mirrors PyTorch __init__ shapes).
# Linear weights are stored transposed vs. PyTorch: (in_features, out_features).
# ----------------------------------------------------------------------------
def _linear_params(key, d_in, d_out):
    kw, kb = jax.random.split(key)
    w = jax.random.normal(kw, (d_in, d_out), jnp.float32) * 0.05
    b = jax.random.normal(kb, (1, d_out), jnp.float32) * 0.01
    return w, b


def _bn_affine(key, d, eps=1e-5):
    """Eval-mode BatchNorm1d folded to per-feature (scale, shift)."""
    k1, k2, k3, k4 = jax.random.split(key, 4)
    gamma = 1.0 + 0.1 * jax.random.normal(k1, (1, d), jnp.float32)
    beta = 0.1 * jax.random.normal(k2, (1, d), jnp.float32)
    run_mean = 0.1 * jax.random.normal(k3, (1, d), jnp.float32)
    run_var = 1.0 + 0.1 * jax.random.uniform(k4, (1, d), jnp.float32)
    scale = gamma / jnp.sqrt(run_var + eps)
    shift = beta - run_mean * scale
    return scale, shift


def make_raw_params(key, in_dim, out_dim, fcn_dims, candidate_num):
    dim_list = [in_dim] + list(fcn_dims)
    keys = jax.random.split(key, len(dim_list))   # (len-1) blocks + proj
    blocks = []
    for i in range(len(dim_list) - 1):
        k1, k2, k3, k4 = jax.random.split(keys[i], 4)
        w1, b1 = _linear_params(k1, dim_list[i], dim_list[i + 1])
        s1, t1 = _bn_affine(k2, dim_list[i + 1])
        w2, b2 = _linear_params(k3, dim_list[i + 1], dim_list[i + 1])
        s2, t2 = _bn_affine(k4, dim_list[i + 1])
        blocks.append(dict(w1=w1, b1=b1, s1=s1, t1=t1,
                           w2=w2, b2=b2, s2=s2, t2=t2))
    wp, bp = _linear_params(keys[-1], dim_list[-1], out_dim * candidate_num)
    return dict(blocks=blocks, proj_w=wp, proj_b=bp, dim_list=dim_list,
                out_dim=out_dim, candidate_num=candidate_num)


# ----------------------------------------------------------------------------
# Host-side fold (BN -> weights) + zero-pad to 128-lane feature dims.
# ----------------------------------------------------------------------------
def _pad2(a, rows, cols):
    return jnp.pad(a, ((0, rows - a.shape[0]), (0, cols - a.shape[1])))


def fold_and_pad(raw):
    dim_list = raw["dim_list"]
    pads = [_round_up(d, LANE) for d in dim_list]
    start_dim = dim_list[0]

    flat = []
    residual_flags = []
    for i, blk in enumerate(raw["blocks"]):
        p_in, p_out = pads[i], pads[i + 1]
        # Fold eval-mode BN into the preceding linear:
        #   (x@W + b)*s + t == x@(W*s) + (b*s + t)     (s, t are (1, d_out) rows)
        w1f = blk["w1"] * blk["s1"]
        b1f = blk["b1"] * blk["s1"] + blk["t1"]
        w2f = blk["w2"] * blk["s2"]
        b2f = blk["b2"] * blk["s2"] + blk["t2"]
        flat += [_pad2(w1f, p_in, p_out), _pad2(b1f, 1, p_out),
                 _pad2(w2f, p_out, p_out), _pad2(b2f, 1, p_out)]
        add_res = (dim_list[i + 1] == start_dim)
        if add_res:
            assert dim_list[i] == dim_list[i + 1], \
                "outer FCN residual requires block in_dim == out_dim"
        residual_flags.append(add_res)

    out_total = raw["out_dim"] * raw["candidate_num"]
    out_pad = _round_up(out_total, LANE)
    flat += [_pad2(raw["proj_w"], pads[-1], out_pad),
             _pad2(raw["proj_b"], 1, out_pad)]

    return dict(flat=flat, residual_flags=tuple(residual_flags),
                num_blocks=len(raw["blocks"]), pads=pads,
                in_pad=pads[0], out_pad=out_pad, out_total=out_total,
                out_dim=raw["out_dim"], candidate_num=raw["candidate_num"])


# ----------------------------------------------------------------------------
# StickmanDecoder forward: one fused pallas_call, then slice + reshape.
# ----------------------------------------------------------------------------
def stickman_decoder_forward(fp, x):
    B = x.shape[0]
    B_pad = _round_up(B, SUBLANE)
    x_pad = jnp.pad(x.astype(jnp.float32),
                    ((0, B_pad - B), (0, fp["in_pad"] - x.shape[1])))

    flat = fp["flat"]
    pads = fp["pads"]

    # Advisory cost estimate for XLA scheduling around the custom call.
    flops = 0
    for i in range(fp["num_blocks"]):
        flops += 2 * B_pad * pads[i] * pads[i + 1]          # fc1
        flops += 2 * B_pad * pads[i + 1] * pads[i + 1]      # fc2
    flops += 2 * B_pad * pads[-1] * fp["out_pad"]           # proj_out
    bytes_accessed = (x_pad.size + B_pad * fp["out_pad"]) * 4
    for a in flat:
        bytes_accessed += a.size * 4

    vmem = pl.BlockSpec(memory_space=pltpu.MemorySpace.VMEM)
    kernel = functools.partial(fused_decoder_kernel,
                               num_blocks=fp["num_blocks"],
                               residual_flags=fp["residual_flags"])

    out_padded = pl.pallas_call(
        kernel,
        out_shape=jax.ShapeDtypeStruct((B_pad, fp["out_pad"]), jnp.float32),
        in_specs=[vmem] * (1 + len(flat)),
        out_specs=vmem,
        cost_estimate=pl.CostEstimate(flops=flops, transcendentals=0,
                                      bytes_accessed=bytes_accessed),
    )(x_pad, *flat)

    out = out_padded[:B, :fp["out_total"]]
    # rearrange 'b (d n c) -> b d n c', d=candidate_num, c=3
    return out.reshape(B, fp["candidate_num"], fp["out_dim"] // 3, 3)


# ----------------------------------------------------------------------------
# Pure-JAX reference (unfolded, unpadded) for correctness checking.
# ----------------------------------------------------------------------------
def stickman_decoder_reference(raw, x):
    dim_list = raw["dim_list"]
    start_dim = dim_list[0]
    for dim, p in zip(dim_list[1:], raw["blocks"]):
        residual = x
        h = x @ p["w1"] + p["b1"]
        h = h * p["s1"] + p["t1"]
        r = h
        h = jnp.maximum(h, 0.0)
        h = h @ p["w2"] + p["b2"]
        h = h * p["s2"] + p["t2"]
        h = h + r
        if dim == start_dim:
            h = h + residual
        x = h
    x = x @ raw["proj_w"] + raw["proj_b"]
    b = x.shape[0]
    return x.reshape(b, raw["candidate_num"], raw["out_dim"] // 3, 3)


# ----------------------------------------------------------------------------
if __name__ == "__main__":
    # cfg: in_dim=32, fcn_dims=[32, 64], out_dim=12, candidate_num=4, dropout=0.1
    batch = 8
    in_dim = 32
    fcn_dims = [32, 64]
    out_dim = 12           # divisible by 3 -> n = 4 joints
    candidate_num = 4

    key = jax.random.PRNGKey(0)
    k_params, k_x = jax.random.split(key)
    raw_params = make_raw_params(k_params, in_dim, out_dim, fcn_dims, candidate_num)
    fused_params = fold_and_pad(raw_params)

    x = jax.random.normal(k_x, (batch, in_dim), jnp.float32)

    fwd = jax.jit(functools.partial(stickman_decoder_forward, fused_params))
    out = fwd(x)
    out = jax.block_until_ready(out)

    ref = stickman_decoder_reference(raw_params, x)
    assert out.shape == (batch, candidate_num, out_dim // 3, 3), out.shape
    np.testing.assert_allclose(np.asarray(out), np.asarray(ref),
                               rtol=1e-4, atol=1e-5)

    print("KERNEL_OK")
</pallas_src>

<mosaic_0001>
module attributes {stable_mosaic.version = 11 : i64} {
  func.func @fused_decoder_kernel(%arg0: memref<8x128xf32, #tpu.memory_space<vmem>>, %arg1: memref<128x128xf32, #tpu.memory_space<vmem>>, %arg2: memref<1x128xf32, #tpu.memory_space<vmem>>, %arg3: memref<128x128xf32, #tpu.memory_space<vmem>>, %arg4: memref<1x128xf32, #tpu.memory_space<vmem>>, %arg5: memref<128x128xf32, #tpu.memory_space<vmem>>, %arg6: memref<1x128xf32, #tpu.memory_space<vmem>>, %arg7: memref<128x128xf32, #tpu.memory_space<vmem>>, %arg8: memref<1x128xf32, #tpu.memory_space<vmem>>, %arg9: memref<128x128xf32, #tpu.memory_space<vmem>>, %arg10: memref<1x128xf32, #tpu.memory_space<vmem>>, %arg11: memref<8x128xf32, #tpu.memory_space<vmem>>) attributes {dimension_semantics = [], scalar_prefetch = 0 : i64, scratch_operands = 0 : i64, tpu.core_type = #tpu.core_type<tc>} {
    %c0 = arith.constant 0 : index
    %c0_0 = arith.constant 0 : index
    %0 = vector.load %arg0[%c0, %c0_0] : memref<8x128xf32, #tpu.memory_space<vmem>>, vector<8x128xf32>
    %c0_1 = arith.constant 0 : index
    %c0_2 = arith.constant 0 : index
    %1 = vector.load %arg1[%c0_1, %c0_2] : memref<128x128xf32, #tpu.memory_space<vmem>>, vector<128x128xf32>
    %cst = arith.constant dense<0.000000e+00> : vector<8x128xf32>
    %2 = tpu.matmul %0, %1, %cst {dimension_numbers = #tpu.dot_dimension_numbers<[1], [0], [0], [1], [0, 0, 1, 1], [], []>} : vector<8x128xf32>, vector<128x128xf32>, vector<8x128xf32> -> vector<8x128xf32>
    %c0_3 = arith.constant 0 : index
    %c0_4 = arith.constant 0 : index
    %3 = vector.load %arg2[%c0_3, %c0_4] : memref<1x128xf32, #tpu.memory_space<vmem>>, vector<1x128xf32>
    %4 = vector.broadcast %3 : vector<1x128xf32> to vector<8x128xf32>
    %5 = arith.addf %2, %4 : vector<8x128xf32>
    %cst_5 = arith.constant 0.000000e+00 : f32
    %6 = vector.broadcast %cst_5 : f32 to vector<8x128xf32>
    %7 = arith.maximumf %5, %6 : vector<8x128xf32>
    %c0_6 = arith.constant 0 : index
    %c0_7 = arith.constant 0 : index
    %8 = vector.load %arg3[%c0_6, %c0_7] : memref<128x128xf32, #tpu.memory_space<vmem>>, vector<128x128xf32>
    %cst_8 = arith.constant dense<0.000000e+00> : vector<8x128xf32>
    %9 = tpu.matmul %7, %8, %cst_8 {dimension_numbers = #tpu.dot_dimension_numbers<[1], [0], [0], [1], [0, 0, 1, 1], [], []>} : vector<8x128xf32>, vector<128x128xf32>, vector<8x128xf32> -> vector<8x128xf32>
    %c0_9 = arith.constant 0 : index
    %c0_10 = arith.constant 0 : index
    %10 = vector.load %arg4[%c0_9, %c0_10] : memref<1x128xf32, #tpu.memory_space<vmem>>, vector<1x128xf32>
    %11 = vector.broadcast %10 : vector<1x128xf32> to vector<8x128xf32>
    %12 = arith.addf %9, %11 : vector<8x128xf32>
    %13 = arith.addf %12, %5 : vector<8x128xf32>
    %14 = arith.addf %13, %0 : vector<8x128xf32>
    %c0_11 = arith.constant 0 : index
    %c0_12 = arith.constant 0 : index
    %15 = vector.load %arg5[%c0_11, %c0_12] : memref<128x128xf32, #tpu.memory_space<vmem>>, vector<128x128xf32>
    %cst_13 = arith.constant dense<0.000000e+00> : vector<8x128xf32>
    %16 = tpu.matmul %14, %15, %cst_13 {dimension_numbers = #tpu.dot_dimension_numbers<[1], [0], [0], [1], [0, 0, 1, 1], [], []>} : vector<8x128xf32>, vector<128x128xf32>, vector<8x128xf32> -> vector<8x128xf32>
    %c0_14 = arith.constant 0 : index
    %c0_15 = arith.constant 0 : index
    %17 = vector.load %arg6[%c0_14, %c0_15] : memref<1x128xf32, #tpu.memory_space<vmem>>, vector<1x128xf32>
    %18 = vector.broadcast %17 : vector<1x128xf32> to vector<8x128xf32>
    %19 = arith.addf %16, %18 : vector<8x128xf32>
    %cst_16 = arith.constant 0.000000e+00 : f32
    %20 = vector.broadcast %cst_16 : f32 to vector<8x128xf32>
    %21 = arith.maximumf %19, %20 : vector<8x128xf32>
    %c0_17 = arith.constant 0 : index
    %c0_18 = arith.constant 0 : index
    %22 = vector.load %arg7[%c0_17, %c0_18] : memref<128x128xf32, #tpu.memory_space<vmem>>, vector<128x128xf32>
    %cst_19 = arith.constant dense<0.000000e+00> : vector<8x128xf32>
    %23 = tpu.matmul %21, %22, %cst_19 {dimension_numbers = #tpu.dot_dimension_numbers<[1], [0], [0], [1], [0, 0, 1, 1], [], []>} : vector<8x128xf32>, vector<128x128xf32>, vector<8x128xf32> -> vector<8x128xf32>
    %c0_20 = arith.constant 0 : index
    %c0_21 = arith.constant 0 : index
    %24 = vector.load %arg8[%c0_20, %c0_21] : memref<1x128xf32, #tpu.memory_space<vmem>>, vector<1x128xf32>
    %25 = vector.broadcast %24 : vector<1x128xf32> to vector<8x128xf32>
    %26 = arith.addf %23, %25 : vector<8x128xf32>
    %27 = arith.addf %26, %19 : vector<8x128xf32>
    %c0_22 = arith.constant 0 : index
    %c0_23 = arith.constant 0 : index
    %28 = vector.load %arg9[%c0_22, %c0_23] : memref<128x128xf32, #tpu.memory_space<vmem>>, vector<128x128xf32>
    %cst_24 = arith.constant dense<0.000000e+00> : vector<8x128xf32>
    %29 = tpu.matmul %27, %28, %cst_24 {dimension_numbers = #tpu.dot_dimension_numbers<[1], [0], [0], [1], [0, 0, 1, 1], [], []>} : vector<8x128xf32>, vector<128x128xf32>, vector<8x128xf32> -> vector<8x128xf32>
    %c0_25 = arith.constant 0 : index
    %c0_26 = arith.constant 0 : index
    %30 = vector.load %arg10[%c0_25, %c0_26] : memref<1x128xf32, #tpu.memory_space<vmem>>, vector<1x128xf32>
    %31 = vector.broadcast %30 : vector<1x128xf32> to vector<8x128xf32>
    %32 = arith.addf %29, %31 : vector<8x128xf32>
    %c0_27 = arith.constant 0 : index
    %c0_28 = arith.constant 0 : index
    %33 = vector.load %arg11[%c0_27, %c0_28] : memref<8x128xf32, #tpu.memory_space<vmem>>, vector<8x128xf32>
    tpu.vector_store %arg11[%c0_27, %c0_28], %32 {strides = array<i32>} : memref<8x128xf32, #tpu.memory_space<vmem>>, vector<8x128xf32>,
    return
  }
}

</mosaic_0001>

<llo_original>
// kernel: stickman_decoder_forward.1
$region0: #{stickman_decoder_forward.1}
  #allocation0 [shape = 'u32[]', space=smem, size = 0x4, offset = 0x4, fixed_abs, tag = 'smem constant byte address 0x4 - core index']
  #allocation1 [shape = 'u32[144,128]{1,0:T(1,128)}', space=vmem, size = 0x12000, scoped, tag = 'internal scratch']
  %s0 = inlined_call_operand.vmem [shape: f32[8,128], index: 0, kind: input, shape index: {}]
  %s1 = inlined_call_operand.hbm [shape: f32[128,128], index: 1, kind: input, shape index: {}]
  %s2 = inlined_call_operand.vmem [shape: f32[1,128], index: 2, kind: input, shape index: {}]
  %s3 = inlined_call_operand.hbm [shape: f32[128,128], index: 3, kind: input, shape index: {}]
  %s4 = inlined_call_operand.vmem [shape: f32[1,128], index: 4, kind: input, shape index: {}]
  %s5 = inlined_call_operand.hbm [shape: f32[128,128], index: 5, kind: input, shape index: {}]
  %s6 = inlined_call_operand.vmem [shape: f32[1,128], index: 6, kind: input, shape index: {}]
  %s7 = inlined_call_operand.hbm [shape: f32[128,128], index: 7, kind: input, shape index: {}]
  %s8 = inlined_call_operand.vmem [shape: f32[1,128], index: 8, kind: input, shape index: {}]
  %s9 = inlined_call_operand.hbm [shape: f32[128,128], index: 9, kind: input, shape index: {}]
  %s10 = inlined_call_operand.vmem [shape: f32[1,128], index: 10, kind: input, shape index: {}]
  %s11 = inlined_call_operand.vmem [shape: f32[8,128], index: 11, kind: output, shape index: {}]
  %s12 = sld [smem:[#allocation0]]
  $region74: #{stickman_decoder_forward.1} parent=0
    _
  %s14 = ssub.s32 1, %s12
  %s15 = scalar_select 0, %s14, %s12
  $region1: #{stickman_decoder_forward.1} parent=0
    #allocation2 [shape = 'u8[65536]{0}', space=vmem, size = 0x10000, scoped, tag = 'input window, operand 1, single buffered']
    #allocation3 [shape = 's32[1]{0}', space=sflag, size = 0x4, scoped, tag = 'scoped memory for stickman_decoder_forward.1']
    #allocation4 [shape = 'u8[65536]{0}', space=vmem, size = 0x10000, scoped, tag = 'input window, operand 3, single buffered']
    #allocation5 [shape = 's32[1]{0}', space=sflag, size = 0x4, scoped, tag = 'scoped memory for stickman_decoder_forward.1']
    #allocation6 [shape = 'u8[65536]{0}', space=vmem, size = 0x10000, scoped, tag = 'input window, operand 5, single buffered']
    #allocation7 [shape = 'u8[65536]{0}', space=vmem, size = 0x10000, scoped, tag = 'input window, operand 7, single buffered']
    #allocation8 [shape = 's32[1]{0}', space=sflag, size = 0x4, scoped, tag = 'scoped memory for stickman_decoder_forward.1']
    #allocation9 [shape = 'u8[65536]{0}', space=vmem, size = 0x10000, scoped, tag = 'input window, operand 9, single buffered']
    %16 = vsyncpa [#allocation3], 0
    %17 = vsyncpa [#allocation5], 0
    %18 = vsyncpa [#allocation8], 0
    // Predicated region
    $region2: #{stickman_decoder_forward.1} parent=1 // pred_check
      _
    $region3: #{stickman_decoder_forward.1} parent=1 // pred_check_branch
      %20 = sbr.rel (0) target = $region5
    $region4: #{stickman_decoder_forward.1} parent=1 // pred_region
      _
    $region5: #{stickman_decoder_forward.1} parent=1 // pred_fallthru
      _
    // Predicated region
    $region6: #{stickman_decoder_forward.1} parent=1 // pred_check
      _
    $region7: #{stickman_decoder_forward.1} parent=1 // pred_check_branch
      %22 = sbr.rel (0) target = $region9
    $region8: #{stickman_decoder_forward.1} parent=1 // pred_region
      %s24 = ssub.s32 2048, 2048
      %25 = vsyncadd [#allocation3], %s24
      %s26 = sshll.u32 [#allocation2], 4
      %s27 = int_to_ptr.vmem [resolvable:$true] %s26
      %32 = dma.hbm_to_vmem [thread:$0]  %s1, 2048, %s27, [#allocation3], 128, 128, 8
    $region9: #{stickman_decoder_forward.1} parent=1 // pred_fallthru
      _
    // Predicated region
    $region10: #{stickman_decoder_forward.1} parent=1 // pred_check
      _
    $region11: #{stickman_decoder_forward.1} parent=1 // pred_check_branch
      %34 = sbr.rel (0) target = $region13
    $region12: #{stickman_decoder_forward.1} parent=1 // pred_region
      _
    $region13: #{stickman_decoder_forward.1} parent=1 // pred_fallthru
      _
    // Predicated region
    $region14: #{stickman_decoder_forward.1} parent=1 // pred_check
      _
    $region15: #{stickman_decoder_forward.1} parent=1 // pred_check_branch
      %36 = sbr.rel (0) target = $region17
    $region16: #{stickman_decoder_forward.1} parent=1 // pred_region
      %s38 = ssub.s32 2048, 2048
      %39 = vsyncadd [#allocation5], %s38
      %s40 = sshll.u32 [#allocation4], 4
      %s41 = int_to_ptr.vmem [resolvable:$true] %s40
      %46 = dma.hbm_to_vmem [thread:$0]  %s3, 2048, %s41, [#allocation5], 128, 128, 8
    $region17: #{stickman_decoder_forward.1} parent=1 // pred_fallthru
      _
    // Predicated region
    $region18: #{stickman_decoder_forward.1} parent=1 // pred_check
      _
    $region19: #{stickman_decoder_forward.1} parent=1 // pred_check_branch
      %48 = sbr.rel (0) target = $region21
    $region20: #{stickman_decoder_forward.1} parent=1 // pred_region
      _
    $region21: #{stickman_decoder_forward.1} parent=1 // pred_fallthru
      _
    // Predicated region
    $region22: #{stickman_decoder_forward.1} parent=1 // pred_check
      _
    $region23: #{stickman_decoder_forward.1} parent=1 // pred_check_branch
      %50 = sbr.rel (0) target = $region25
    $region24: #{stickman_decoder_forward.1} parent=1 // pred_region
      %s52 = ssub.s32 2048, 2048
      %53 = vsyncadd [#allocation5], %s52
      %s54 = sshll.u32 [#allocation6], 4
      %s55 = int_to_ptr.vmem [resolvable:$true] %s54
      %60 = dma.hbm_to_vmem [thread:$0]  %s5, 2048, %s55, [#allocation5], 128, 128, 8
    $region25: #{stickman_decoder_forward.1} parent=1 // pred_fallthru
      _
    // Predicated region
    $region26: #{stickman_decoder_forward.1} parent=1 // pred_check
      _
    $region27: #{stickman_decoder_forward.1} parent=1 // pred_check_branch
      %62 = sbr.rel (0) target = $region29
    $region28: #{stickman_decoder_forward.1} parent=1 // pred_region
      _
    $region29: #{stickman_decoder_forward.1} parent=1 // pred_fallthru
      _
    // Predicated region
    $region30: #{stickman_decoder_forward.1} parent=1 // pred_check
      _
    $region31: #{stickman_decoder_forward.1} parent=1 // pred_check_branch
      %64 = sbr.rel (0) target = $region33
    $region32: #{stickman_decoder_forward.1} parent=1 // pred_region
      %s66 = ssub.s32 2048, 2048
      %67 = vsyncadd [#allocation8], %s66
      %s68 = sshll.u32 [#allocation7], 4
      %s69 = int_to_ptr.vmem [resolvable:$true] %s68
      %74 = dma.hbm_to_vmem [thread:$0]  %s7, 2048, %s69, [#allocation8], 128, 128, 8
    $region33: #{stickman_decoder_forward.1} parent=1 // pred_fallthru
      _
    // Predicated region
    $region34: #{stickman_decoder_forward.1} parent=1 // pred_check
      _
    $region35: #{stickman_decoder_forward.1} parent=1 // pred_check_branch
      %76 = sbr.rel (0) target = $region37
    $region36: #{stickman_decoder_forward.1} parent=1 // pred_region
      _
    $region37: #{stickman_decoder_forward.1} parent=1 // pred_fallthru
      _
    // Predicated region
    $region38: #{stickman_decoder_forward.1} parent=1 // pred_check
      _
    $region39: #{stickman_decoder_forward.1} parent=1 // pred_check_branch
      %78 = sbr.rel (0) target = $region41
    $region40: #{stickman_decoder_forward.1} parent=1 // pred_region
      %s80 = ssub.s32 2048, 2048
      %81 = vsyncadd [#allocation8], %s80
      %s82 = sshll.u32 [#allocation9], 4
      %s83 = int_to_ptr.vmem [resolvable:$true] %s82
      %88 = dma.hbm_to_vmem [thread:$0]  %s9, 2048, %s83, [#allocation8], 128, 128, 8
    $region41: #{stickman_decoder_forward.1} parent=1 // pred_fallthru
      _
    // Predicated region
    $region42: #{stickman_decoder_forward.1} parent=1 // pred_check
      _
    $region43: #{stickman_decoder_forward.1} parent=1 // pred_check_branch
      %90 = sbr.rel (0) target = $region45
    $region44: #{stickman_decoder_forward.1} parent=1 // pred_region
      _
    $region45: #{stickman_decoder_forward.1} parent=1 // pred_fallthru
      _
    // Predicated region
    $region46: #{stickman_decoder_forward.1} parent=1 // pred_check
      _
    $region47: #{stickman_decoder_forward.1} parent=1 // pred_check_branch
      %92 = sbr.rel (0) target = $region49
    $region48: #{stickman_decoder_forward.1} parent=1 // pred_region
      %93 = dma.done [#allocation3], 2048
    $region49: #{stickman_decoder_forward.1} parent=1 // pred_fallthru
      _
    // Predicated region
    $region50: #{stickman_decoder_forward.1} parent=1 // pred_check
      _
    $region51: #{stickman_decoder_forward.1} parent=1 // pred_check_branch
      %95 = sbr.rel (0) target = $region53
    $region52: #{stickman_decoder_forward.1} parent=1 // pred_region
      %96 = dma.done [#allocation5], 2048
    $region53: #{stickman_decoder_forward.1} parent=1 // pred_fallthru
      _
    // Predicated region
    $region54: #{stickman_decoder_forward.1} parent=1 // pred_check
      _
    $region55: #{stickman_decoder_forward.1} parent=1 // pred_check_branch
      %98 = sbr.rel (0) target = $region57
    $region56: #{stickman_decoder_forward.1} parent=1 // pred_region
      %99 = dma.done [#allocation5], 2048
    $region57: #{stickman_decoder_forward.1} parent=1 // pred_fallthru
      _
    // Predicated region
    $region58: #{stickman_decoder_forward.1} parent=1 // pred_check
      _
    $region59: #{stickman_decoder_forward.1} parent=1 // pred_check_branch
      %101 = sbr.rel (0) target = $region61
    $region60: #{stickman_decoder_forward.1} parent=1 // pred_region
      %102 = dma.done [#allocation8], 2048
    $region61: #{stickman_decoder_forward.1} parent=1 // pred_fallthru
      _
    // Predicated region
    $region62: #{stickman_decoder_forward.1} parent=1 // pred_check
      _
    $region63: #{stickman_decoder_forward.1} parent=1 // pred_check_branch
      %104 = sbr.rel (0) target = $region65
    $region64: #{stickman_decoder_forward.1} parent=1 // pred_region
      %105 = dma.done [#allocation8], 2048
    $region65: #{stickman_decoder_forward.1} parent=1 // pred_fallthru
      _
    %v106 = vld [vmem:[%s0] sm:$0xff]
    %v107 = vld [vmem:[#allocation2] sm:$0xff]
    %v108 = vld [vmem:[#allocation2 + $0x8] sm:$0xff]
    %v109 = vld [vmem:[#allocation2 + $0x10] sm:$0xff]
    %v110 = vld [vmem:[#allocation2 + $0x18] sm:$0xff]
    %v111 = vld [vmem:[#allocation2 + $0x20] sm:$0xff]
    %v112 = vld [vmem:[#allocation2 + $0x28] sm:$0xff]
    %v113 = vld [vmem:[#allocation2 + $0x30] sm:$0xff]
    %v114 = vld [vmem:[#allocation2 + $0x38] sm:$0xff]
    %v115 = vld [vmem:[#allocation2 + $0x40] sm:$0xff]
    %v116 = vld [vmem:[#allocation2 + $0x48] sm:$0xff]
    %v117 = vld [vmem:[#allocation2 + $0x50] sm:$0xff]
    %v118 = vld [vmem:[#allocation2 + $0x58] sm:$0xff]
    %v119 = vld [vmem:[#allocation2 + $0x60] sm:$0xff]
    %v120 = vld [vmem:[#allocation2 + $0x68] sm:$0xff]
    %v121 = vld [vmem:[#allocation2 + $0x70] sm:$0xff]
    %v122 = vld [vmem:[#allocation2 + $0x78] sm:$0xff]
    %v123 = vld [vmem:[%s2] sm:$0x1]
    %v125 = vlaneseq
    %v126 = vshrl.u32 %v125, 7
    %v127 = vsub.s32 0, %v126
    %v128 = vrot.slane %v123, %v127
    %130 = vmatprep.subr.mxu0 0.0
    %131 = vmatpush1.msra.mxu0 %v107
    %132 = vmatprep.subr.mxu0 0.0
    %133 = vmatpush1.msra.mxu0 %v108
    %134 = vmatprep.subr.mxu0 0.0
    %135 = vmatpush1.msra.mxu0 %v109
    %136 = vmatprep.subr.mxu0 0.0
    %137 = vmatpush1.msra.mxu0 %v110
    %138 = vmatprep.subr.mxu0 0.0
    %139 = vmatpush1.msra.mxu0 %v111
    %140 = vmatprep.subr.mxu0 0.0
    %141 = vmatpush1.msra.mxu0 %v112
    %142 = vmatprep.subr.mxu0 0.0
    %143 = vmatpush1.msra.mxu0 %v113
    %144 = vmatprep.subr.mxu0 0.0
    %145 = vmatpush1.msra.mxu0 %v114
    %146 = vmatprep.subr.mxu0 0.0
    %147 = vmatpush1.msra.mxu0 %v115
    %148 = vmatprep.subr.mxu0 0.0
    %149 = vmatpush1.msra.mxu0 %v116
    %150 = vmatprep.subr.mxu0 0.0
    %151 = vmatpush1.msra.mxu0 %v117
    %152 = vmatprep.subr.mxu0 0.0
    %153 = vmatpush1.msra.mxu0 %v118
    %154 = vmatprep.subr.mxu0 0.0
    %155 = vmatpush1.msra.mxu0 %v119
    %156 = vmatprep.subr.mxu0 0.0
    %157 = vmatpush1.msra.mxu0 %v120
    %158 = vmatprep.subr.mxu0 0.0
    %159 = vmatpush1.msra.mxu0 %v121
    %160 = vmatprep.subr.mxu0 0.0
    %161 = vmatpush1.msra.mxu0 %v122
    %162 = vmatprep.subr.mxu0 0.0
    %163 = vmatpush1.msra.mxu0 0.0
    %164 = vmatprep.subr.mxu0 0.0
    %165 = vmatpush1.msra.mxu0 0.0
    %166 = vmatprep.subr.mxu0 0.0
    %167 = vmatpush1.msra.mxu0 0.0
    %168 = vmatprep.subr.mxu0 0.0
    %169 = vmatpush1.msra.mxu0 0.0
    %170 = vmatprep.subr.mxu0 0.0
    %171 = vmatpush1.msra.mxu0 0.0
    %172 = vmatprep.subr.mxu0 0.0
    %173 = vmatpush1.msra.mxu0 0.0
    %174 = vmatprep.subr.mxu0 0.0
    %175 = vmatpush1.msra.mxu0 0.0
    %176 = vmatprep.subr.mxu0 0.0
    %177 = vmatpush1.msra.mxu0 0.0
    %178 = vmatprep.subr.mxu0 0.0
    %179 = vmatpush1.msra.mxu0 0.0
    %180 = vmatprep.subr.mxu0 0.0
    %181 = vmatpush1.msra.mxu0 0.0
    %182 = vmatprep.subr.mxu0 0.0
    %183 = vmatpush1.msra.mxu0 0.0
    %184 = vmatprep.subr.mxu0 0.0
    %185 = vmatpush1.msra.mxu0 0.0
    %186 = vmatprep.subr.mxu0 0.0
    %187 = vmatpush1.msra.mxu0 0.0
    %188 = vmatprep.subr.mxu0 0.0
    %189 = vmatpush1.msra.mxu0 0.0
    %190 = vmatprep.subr.mxu0 0.0
    %191 = vmatpush1.msra.mxu0 0.0
    %192 = vmatprep.subr.mxu0 0.0
    %193 = vmatpush1.msra.mxu0 0.0
    %194 = vmatprep.mubr.f32.mxu0 0.0
    %195 = vmatmul.mubr.f32.gmra.mrb[0].mxu0 %v106
    %v196 = vpop.f32.mrb[0].mxu0
    %v197 = vadd.f32 %v128, %v196
    %v198 = vpop.f32.mrb[0].mxu0
    %199 = vdwg.mxu0
    %v200 = vmax.f32 %v197, 0.0
    %v201 = vld [vmem:[#allocation4] sm:$0xff]
    %v202 = vld [vmem:[#allocation4 + $0x8] sm:$0xff]
    %v203 = vld [vmem:[#allocation4 + $0x10] sm:$0xff]
    %v204 = vld [vmem:[#allocation4 + $0x18] sm:$0xff]
    %v205 = vld [vmem:[#allocation4 + $0x20] sm:$0xff]
    %v206 = vld [vmem:[#allocation4 + $0x28] sm:$0xff]
    %v207 = vld [vmem:[#allocation4 + $0x30] sm:$0xff]
    %v208 = vld [vmem:[#allocation4 + $0x38] sm:$0xff]
    %v209 = vld [vmem:[#allocation4 + $0x40] sm:$0xff]
    %v210 = vld [vmem:[#allocation4 + $0x48] sm:$0xff]
    %v211 = vld [vmem:[#allocation4 + $0x50] sm:$0xff]
    %v212 = vld [vmem:[#allocation4 + $0x58] sm:$0xff]
    %v213 = vld [vmem:[#allocation4 + $0x60] sm:$0xff]
    %v214 = vld [vmem:[#allocation4 + $0x68] sm:$0xff]
    %v215 = vld [vmem:[#allocation4 + $0x70] sm:$0xff]
    %v216 = vld [vmem:[#allocation4 + $0x78] sm:$0xff]
    %v217 = vld [vmem:[%s4] sm:$0x1]
    %v219 = vlaneseq
    %v220 = vshrl.u32 %v219, 7
    %v221 = vsub.s32 0, %v220
    %v222 = vrot.slane %v217, %v221
    %224 = vmatprep.subr.mxu0 0.0
    %225 = vmatpush1.msra.mxu0 %v201
    %226 = vmatprep.subr.mxu0 0.0
    %227 = vmatpush1.msra.mxu0 %v202
    %228 = vmatprep.subr.mxu0 0.0
    %229 = vmatpush1.msra.mxu0 %v203
    %230 = vmatprep.subr.mxu0 0.0
    %231 = vmatpush1.msra.mxu0 %v204
    %232 = vmatprep.subr.mxu0 0.0
    %233 = vmatpush1.msra.mxu0 %v205
    %234 = vmatprep.subr.mxu0 0.0
    %235 = vmatpush1.msra.mxu0 %v206
    %236 = vmatprep.subr.mxu0 0.0
    %237 = vmatpush1.msra.mxu0 %v207
    %238 = vmatprep.subr.mxu0 0.0
    %239 = vmatpush1.msra.mxu0 %v208
    %240 = vmatprep.subr.mxu0 0.0
    %241 = vmatpush1.msra.mxu0 %v209
    %242 = vmatprep.subr.mxu0 0.0
    %243 = vmatpush1.msra.mxu0 %v210
    %244 = vmatprep.subr.mxu0 0.0
    %245 = vmatpush1.msra.mxu0 %v211
    %246 = vmatprep.subr.mxu0 0.0
    %247 = vmatpush1.msra.mxu0 %v212
    %248 = vmatprep.subr.mxu0 0.0
    %249 = vmatpush1.msra.mxu0 %v213
    %250 = vmatprep.subr.mxu0 0.0
    %251 = vmatpush1.msra.mxu0 %v214
    %252 = vmatprep.subr.mxu0 0.0
    %253 = vmatpush1.msra.mxu0 %v215
    %254 = vmatprep.subr.mxu0 0.0
    %255 = vmatpush1.msra.mxu0 %v216
    %256 = vmatprep.subr.mxu0 0.0
    %257 = vmatpush1.msra.mxu0 0.0
    %258 = vmatprep.subr.mxu0 0.0
    %259 = vmatpush1.msra.mxu0 0.0
    %260 = vmatprep.subr.mxu0 0.0
    %261 = vmatpush1.msra.mxu0 0.0
    %262 = vmatprep.subr.mxu0 0.0
    %263 = vmatpush1.msra.mxu0 0.0
    %264 = vmatprep.subr.mxu0 0.0
    %265 = vmatpush1.msra.mxu0 0.0
    %266 = vmatprep.subr.mxu0 0.0
    %267 = vmatpush1.msra.mxu0 0.0
    %268 = vmatprep.subr.mxu0 0.0
    %269 = vmatpush1.msra.mxu0 0.0
    %270 = vmatprep.subr.mxu0 0.0
    %271 = vmatpush1.msra.mxu0 0.0
    %272 = vmatprep.subr.mxu0 0.0
    %273 = vmatpush1.msra.mxu0 0.0
    %274 = vmatprep.subr.mxu0 0.0
    %275 = vmatpush1.msra.mxu0 0.0
    %276 = vmatprep.subr.mxu0 0.0
    %277 = vmatpush1.msra.mxu0 0.0
    %278 = vmatprep.subr.mxu0 0.0
    %279 = vmatpush1.msra.mxu0 0.0
    %280 = vmatprep.subr.mxu0 0.0
    %281 = vmatpush1.msra.mxu0 0.0
    %282 = vmatprep.subr.mxu0 0.0
    %283 = vmatpush1.msra.mxu0 0.0
    %284 = vmatprep.subr.mxu0 0.0
    %285 = vmatpush1.msra.mxu0 0.0
    %286 = vmatprep.subr.mxu0 0.0
    %287 = vmatpush1.msra.mxu0 0.0
    %288 = vmatprep.mubr.f32.mxu0 0.0
    %289 = vmatmul.mubr.f32.gmra.mrb[0].mxu0 %v200
    %v290 = vpop.f32.mrb[0].mxu0
    %v291 = vadd.f32 %v222, %v290
    %v292 = vpop.f32.mrb[0].mxu0
    %293 = vdwg.mxu0
    %v294 = vadd.f32 %v291, %v197
    %v295 = vadd.f32 %v294, %v106
    %v296 = vld [vmem:[#allocation6] sm:$0xff]
    %v297 = vld [vmem:[#allocation6 + $0x8] sm:$0xff]
    %v298 = vld [vmem:[#allocation6 + $0x10] sm:$0xff]
    %v299 = vld [vmem:[#allocation6 + $0x18] sm:$0xff]
    %v300 = vld [vmem:[#allocation6 + $0x20] sm:$0xff]
    %v301 = vld [vmem:[#allocation6 + $0x28] sm:$0xff]
    %v302 = vld [vmem:[#allocation6 + $0x30] sm:$0xff]
    %v303 = vld [vmem:[#allocation6 + $0x38] sm:$0xff]
    %v304 = vld [vmem:[#allocation6 + $0x40] sm:$0xff]
    %v305 = vld [vmem:[#allocation6 + $0x48] sm:$0xff]
    %v306 = vld [vmem:[#allocation6 + $0x50] sm:$0xff]
    %v307 = vld [vmem:[#allocation6 + $0x58] sm:$0xff]
    %v308 = vld [vmem:[#allocation6 + $0x60] sm:$0xff]
    %v309 = vld [vmem:[#allocation6 + $0x68] sm:$0xff]
    %v310 = vld [vmem:[#allocation6 + $0x70] sm:$0xff]
    %v311 = vld [vmem:[#allocation6 + $0x78] sm:$0xff]
    %v312 = vld [vmem:[%s6] sm:$0x1]
    %v314 = vlaneseq
    %v315 = vshrl.u32 %v314, 7
    %v316 = vsub.s32 0, %v315
    %v317 = vrot.slane %v312, %v316
    %319 = vmatprep.subr.mxu0 0.0
    %320 = vmatpush1.msra.mxu0 %v296
    %321 = vmatprep.subr.mxu0 0.0
    %322 = vmatpush1.msra.mxu0 %v297
    %323 = vmatprep.subr.mxu0 0.0
    %324 = vmatpush1.msra.mxu0 %v298
    %325 = vmatprep.subr.mxu0 0.0
    %326 = vmatpush1.msra.mxu0 %v299
    %327 = vmatprep.subr.mxu0 0.0
    %328 = vmatpush1.msra.mxu0 %v300
    %329 = vmatprep.subr.mxu0 0.0
    %330 = vmatpush1.msra.mxu0 %v301
    %331 = vmatprep.subr.mxu0 0.0
    %332 = vmatpush1.msra.mxu0 %v302
    %333 = vmatprep.subr.mxu0 0.0
    %334 = vmatpush1.msra.mxu0 %v303
    %335 = vmatprep.subr.mxu0 0.0
    %336 = vmatpush1.msra.mxu0 %v304
    %337 = vmatprep.subr.mxu0 0.0
    %338 = vmatpush1.msra.mxu0 %v305
    %339 = vmatprep.subr.mxu0 0.0
    %340 = vmatpush1.msra.mxu0 %v306
    %341 = vmatprep.subr.mxu0 0.0
    %342 = vmatpush1.msra.mxu0 %v307
    %343 = vmatprep.subr.mxu0 0.0
    %344 = vmatpush1.msra.mxu0 %v308
    %345 = vmatprep.subr.mxu0 0.0
    %346 = vmatpush1.msra.mxu0 %v309
    %347 = vmatprep.subr.mxu0 0.0
    %348 = vmatpush1.msra.mxu0 %v310
    %349 = vmatprep.subr.mxu0 0.0
    %350 = vmatpush1.msra.mxu0 %v311
    %351 = vmatprep.subr.mxu0 0.0
    %352 = vmatpush1.msra.mxu0 0.0
    %353 = vmatprep.subr.mxu0 0.0
    %354 = vmatpush1.msra.mxu0 0.0
    %355 = vmatprep.subr.mxu0 0.0
    %356 = vmatpush1.msra.mxu0 0.0
    %357 = vmatprep.subr.mxu0 0.0
    %358 = vmatpush1.msra.mxu0 0.0
    %359 = vmatprep.subr.mxu0 0.0
    %360 = vmatpush1.msra.mxu0 0.0
    %361 = vmatprep.subr.mxu0 0.0
    %362 = vmatpush1.msra.mxu0 0.0
    %363 = vmatprep.subr.mxu0 0.0
    %364 = vmatpush1.msra.mxu0 0.0
    %365 = vmatprep.subr.mxu0 0.0
    %366 = vmatpush1.msra.mxu0 0.0
    %367 = vmatprep.subr.mxu0 0.0
    %368 = vmatpush1.msra.mxu0 0.0
    %369 = vmatprep.subr.mxu0 0.0
    %370 = vmatpush1.msra.mxu0 0.0
    %371 = vmatprep.subr.mxu0 0.0
    %372 = vmatpush1.msra.mxu0 0.0
    %373 = vmatprep.subr.mxu0 0.0
    %374 = vmatpush1.msra.mxu0 0.0
    %375 = vmatprep.subr.mxu0 0.0
    %376 = vmatpush1.msra.mxu0 0.0
    %377 = vmatprep.subr.mxu0 0.0
    %378 = vmatpush1.msra.mxu0 0.0
    %379 = vmatprep.subr.mxu0 0.0
    %380 = vmatpush1.msra.mxu0 0.0
    %381 = vmatprep.subr.mxu0 0.0
    %382 = vmatpush1.msra.mxu0 0.0
    %383 = vmatprep.mubr.f32.mxu0 0.0
    %384 = vmatmul.mubr.f32.gmra.mrb[0].mxu0 %v295
    %v385 = vpop.f32.mrb[0].mxu0
    %v386 = vadd.f32 %v317, %v385
    %v387 = vpop.f32.mrb[0].mxu0
    %388 = vdwg.mxu0
    %v389 = vmax.f32 %v386, 0.0
    %v390 = vld [vmem:[#allocation7] sm:$0xff]
    %v391 = vld [vmem:[#allocation7 + $0x8] sm:$0xff]
    %v392 = vld [vmem:[#allocation7 + $0x10] sm:$0xff]
    %v393 = vld [vmem:[#allocation7 + $0x18] sm:$0xff]
    %v394 = vld [vmem:[#allocation7 + $0x20] sm:$0xff]
    %v395 = vld [vmem:[#allocation7 + $0x28] sm:$0xff]
    %v396 = vld [vmem:[#allocation7 + $0x30] sm:$0xff]
    %v397 = vld [vmem:[#allocation7 + $0x38] sm:$0xff]
    %v398 = vld [vmem:[#allocation7 + $0x40] sm:$0xff]
    %v399 = vld [vmem:[#allocation7 + $0x48] sm:$0xff]
    %v400 = vld [vmem:[#allocation7 + $0x50] sm:$0xff]
    %v401 = vld [vmem:[#allocation7 + $0x58] sm:$0xff]
    %v402 = vld [vmem:[#allocation7 + $0x60] sm:$0xff]
    %v403 = vld [vmem:[#allocation7 + $0x68] sm:$0xff]
    %v404 = vld [vmem:[#allocation7 + $0x70] sm:$0xff]
    %v405 = vld [vmem:[#allocation7 + $0x78] sm:$0xff]
    %v406 = vld [vmem:[%s8] sm:$0x1]
    %v408 = vlaneseq
    %v409 = vshrl.u32 %v408, 7
    %v410 = vsub.s32 0, %v409
    %v411 = vrot.slane %v406, %v410
    %413 = vmatprep.subr.mxu0 0.0
    %414 = vmatpush1.msra.mxu0 %v390
    %415 = vmatprep.subr.mxu0 0.0
    %416 = vmatpush1.msra.mxu0 %v391
    %417 = vmatprep.subr.mxu0 0.0
    %418 = vmatpush1.msra.mxu0 %v392
    %419 = vmatprep.subr.mxu0 0.0
    %420 = vmatpush1.msra.mxu0 %v393
    %421 = vmatprep.subr.mxu0 0.0
    %422 = vmatpush1.msra.mxu0 %v394
    %423 = vmatprep.subr.mxu0 0.0
    %424 = vmatpush1.msra.mxu0 %v395
    %425 = vmatprep.subr.mxu0 0.0
    %426 = vmatpush1.msra.mxu0 %v396
    %427 = vmatprep.subr.mxu0 0.0
    %428 = vmatpush1.msra.mxu0 %v397
    %429 = vmatprep.subr.mxu0 0.0
    %430 = vmatpush1.msra.mxu0 %v398
    %431 = vmatprep.subr.mxu0 0.0
    %432 = vmatpush1.msra.mxu0 %v399
    %433 = vmatprep.subr.mxu0 0.0
    %434 = vmatpush1.msra.mxu0 %v400
    %435 = vmatprep.subr.mxu0 0.0
    %436 = vmatpush1.msra.mxu0 %v401
    %437 = vmatprep.subr.mxu0 0.0
    %438 = vmatpush1.msra.mxu0 %v402
    %439 = vmatprep.subr.mxu0 0.0
    %440 = vmatpush1.msra.mxu0 %v403
    %441 = vmatprep.subr.mxu0 0.0
    %442 = vmatpush1.msra.mxu0 %v404
    %443 = vmatprep.subr.mxu0 0.0
    %444 = vmatpush1.msra.mxu0 %v405
    %445 = vmatprep.subr.mxu0 0.0
    %446 = vmatpush1.msra.mxu0 0.0
    %447 = vmatprep.subr.mxu0 0.0
    %448 = vmatpush1.msra.mxu0 0.0
    %449 = vmatprep.subr.mxu0 0.0
    %450 = vmatpush1.msra.mxu0 0.0
    %451 = vmatprep.subr.mxu0 0.0
    %452 = vmatpush1.msra.mxu0 0.0
    %453 = vmatprep.subr.mxu0 0.0
    %454 = vmatpush1.msra.mxu0 0.0
    %455 = vmatprep.subr.mxu0 0.0
    %456 = vmatpush1.msra.mxu0 0.0
    %457 = vmatprep.subr.mxu0 0.0
    %458 = vmatpush1.msra.mxu0 0.0
    %459 = vmatprep.subr.mxu0 0.0
    %460 = vmatpush1.msra.mxu0 0.0
    %461 = vmatprep.subr.mxu0 0.0
    %462 = vmatpush1.msra.mxu0 0.0
    %463 = vmatprep.subr.mxu0 0.0
    %464 = vmatpush1.msra.mxu0 0.0
    %465 = vmatprep.subr.mxu0 0.0
    %466 = vmatpush1.msra.mxu0 0.0
    %467 = vmatprep.subr.mxu0 0.0
    %468 = vmatpush1.msra.mxu0 0.0
    %469 = vmatprep.subr.mxu0 0.0
    %470 = vmatpush1.msra.mxu0 0.0
    %471 = vmatprep.subr.mxu0 0.0
    %472 = vmatpush1.msra.mxu0 0.0
    %473 = vmatprep.subr.mxu0 0.0
    %474 = vmatpush1.msra.mxu0 0.0
    %475 = vmatprep.subr.mxu0 0.0
    %476 = vmatpush1.msra.mxu0 0.0
    %477 = vmatprep.mubr.f32.mxu0 0.0
    %478 = vmatmul.mubr.f32.gmra.mrb[0].mxu0 %v389
    %v479 = vpop.f32.mrb[0].mxu0
    %v480 = vadd.f32 %v411, %v479
    %v481 = vpop.f32.mrb[0].mxu0
    %482 = vdwg.mxu0
    %v483 = vadd.f32 %v480, %v386
    %v484 = vld [vmem:[#allocation9] sm:$0xff]
    %v485 = vld [vmem:[#allocation9 + $0x8] sm:$0xff]
    %v486 = vld [vmem:[#allocation9 + $0x10] sm:$0xff]
    %v487 = vld [vmem:[#allocation9 + $0x18] sm:$0xff]
    %v488 = vld [vmem:[#allocation9 + $0x20] sm:$0xff]
    %v489 = vld [vmem:[#allocation9 + $0x28] sm:$0xff]
    %v490 = vld [vmem:[#allocation9 + $0x30] sm:$0xff]
    %v491 = vld [vmem:[#allocation9 + $0x38] sm:$0xff]
    %v492 = vld [vmem:[#allocation9 + $0x40] sm:$0xff]
    %v493 = vld [vmem:[#allocation9 + $0x48] sm:$0xff]
    %v494 = vld [vmem:[#allocation9 + $0x50] sm:$0xff]
    %v495 = vld [vmem:[#allocation9 + $0x58] sm:$0xff]
    %v496 = vld [vmem:[#allocation9 + $0x60] sm:$0xff]
    %v497 = vld [vmem:[#allocation9 + $0x68] sm:$0xff]
    %v498 = vld [vmem:[#allocation9 + $0x70] sm:$0xff]
    %v499 = vld [vmem:[#allocation9 + $0x78] sm:$0xff]
    %v500 = vld [vmem:[%s10] sm:$0x1]
    %v502 = vlaneseq
    %v503 = vshrl.u32 %v502, 7
    %v504 = vsub.s32 0, %v503
    %v505 = vrot.slane %v500, %v504
    %507 = vmatprep.subr.mxu0 0.0
    %508 = vmatpush1.msra.mxu0 %v484
    %509 = vmatprep.subr.mxu0 0.0
    %510 = vmatpush1.msra.mxu0 %v485
    %511 = vmatprep.subr.mxu0 0.0
    %512 = vmatpush1.msra.mxu0 %v486
    %513 = vmatprep.subr.mxu0 0.0
    %514 = vmatpush1.msra.mxu0 %v487
    %515 = vmatprep.subr.mxu0 0.0
    %516 = vmatpush1.msra.mxu0 %v488
    %517 = vmatprep.subr.mxu0 0.0
    %518 = vmatpush1.msra.mxu0 %v489
    %519 = vmatprep.subr.mxu0 0.0
    %520 = vmatpush1.msra.mxu0 %v490
    %521 = vmatprep.subr.mxu0 0.0
    %522 = vmatpush1.msra.mxu0 %v491
    %523 = vmatprep.subr.mxu0 0.0
    %524 = vmatpush1.msra.mxu0 %v492
    %525 = vmatprep.subr.mxu0 0.0
    %526 = vmatpush1.msra.mxu0 %v493
    %527 = vmatprep.subr.mxu0 0.0
    %528 = vmatpush1.msra.mxu0 %v494
    %529 = vmatprep.subr.mxu0 0.0
    %530 = vmatpush1.msra.mxu0 %v495
    %531 = vmatprep.subr.mxu0 0.0
    %532 = vmatpush1.msra.mxu0 %v496
    %533 = vmatprep.subr.mxu0 0.0
    %534 = vmatpush1.msra.mxu0 %v497
    %535 = vmatprep.subr.mxu0 0.0
    %536 = vmatpush1.msra.mxu0 %v498
    %537 = vmatprep.subr.mxu0 0.0
    %538 = vmatpush1.msra.mxu0 %v499
    %539 = vmatprep.subr.mxu0 0.0
    %540 = vmatpush1.msra.mxu0 0.0
    %541 = vmatprep.subr.mxu0 0.0
    %542 = vmatpush1.msra.mxu0 0.0
    %543 = vmatprep.subr.mxu0 0.0
    %544 = vmatpush1.msra.mxu0 0.0
    %545 = vmatprep.subr.mxu0 0.0
    %546 = vmatpush1.msra.mxu0 0.0
    %547 = vmatprep.subr.mxu0 0.0
    %548 = vmatpush1.msra.mxu0 0.0
    %549 = vmatprep.subr.mxu0 0.0
    %550 = vmatpush1.msra.mxu0 0.0
    %551 = vmatprep.subr.mxu0 0.0
    %552 = vmatpush1.msra.mxu0 0.0
    %553 = vmatprep.subr.mxu0 0.0
    %554 = vmatpush1.msra.mxu0 0.0
    %555 = vmatprep.subr.mxu0 0.0
    %556 = vmatpush1.msra.mxu0 0.0
    %557 = vmatprep.subr.mxu0 0.0
    %558 = vmatpush1.msra.mxu0 0.0
    %559 = vmatprep.subr.mxu0 0.0
    %560 = vmatpush1.msra.mxu0 0.0
    %561 = vmatprep.subr.mxu0 0.0
    %562 = vmatpush1.msra.mxu0 0.0
    %563 = vmatprep.subr.mxu0 0.0
    %564 = vmatpush1.msra.mxu0 0.0
    %565 = vmatprep.subr.mxu0 0.0
    %566 = vmatpush1.msra.mxu0 0.0
    %567 = vmatprep.subr.mxu0 0.0
    %568 = vmatpush1.msra.mxu0 0.0
    %569 = vmatprep.subr.mxu0 0.0
    %570 = vmatpush1.msra.mxu0 0.0
    %571 = vmatprep.mubr.f32.mxu0 0.0
    %572 = vmatmul.mubr.f32.gmra.mrb[0].mxu0 %v483
    %v573 = vpop.f32.mrb[0].mxu0
    %v574 = vadd.f32 %v505, %v573
    %v575 = vpop.f32.mrb[0].mxu0
    %576 = vdwg.mxu0
    %577 = vst [vmem:[%s11] sm:$0xff] %v574
    // Predicated region
    $region66: #{stickman_decoder_forward.1} parent=1 // pred_check
      _
    $region67: #{stickman_decoder_forward.1} parent=1 // pred_check_branch
      %579 = sbr.rel (0) target = $region69
    $region68: #{stickman_decoder_forward.1} parent=1 // pred_region
      _
    $region69: #{stickman_decoder_forward.1} parent=1 // pred_fallthru
      _
    // Predicated region
    $region70: #{stickman_decoder_forward.1} parent=1 // pred_check
      _
    $region71: #{stickman_decoder_forward.1} parent=1 // pred_check_branch
      %581 = sbr.rel (0) target = $region73
    $region72: #{stickman_decoder_forward.1} parent=1 // pred_region
      _
    $region73: #{stickman_decoder_forward.1} parent=1 // pred_fallthru
      _
    %582 = vsyncpa [#allocation3], 1
    %583 = vsyncpa [#allocation5], 1
    %584 = vsyncpa [#allocation8], 1

</llo_original>
